<compile_context>
chip_gen: v6e
topology: v6e:2x2x1
jax: 0.10.0
libtpu: 0.0.40
codegen_flags: <defaults>
</compile_context>

<pallas_src>
import functools

import jax
import jax.numpy as jnp
from jax.experimental import pallas as pl
from jax.experimental.pallas import tpu as pltpu

LN_EPS = 1e-5  # PyTorch nn.LayerNorm default


def _round_up(n, m):
    return ((n + m - 1) // m) * m


def _ln_relu(h, gamma, beta):
    """Two-pass LayerNorm (PyTorch-faithful numerics) followed by ReLU. fp32."""
    mu = jnp.mean(h, axis=-1, keepdims=True)
    d = h - mu
    var = jnp.mean(d * d, axis=-1, keepdims=True)
    y = d * jax.lax.rsqrt(var + LN_EPS) * gamma + beta
    return jnp.maximum(y, 0.0)


def _critic_kernel(x_ref, p_ref, out_ref, *, n_q, layout, return_q_min):
    """All q-nets evaluated in one invocation (static unroll over n_q).

    p_ref is the single packed parameter buffer, (n_q, R, W):
      rows [r_w1   : r_w1+dp )  : w1   (dp x H1, zero-padded rows/cols)
      rows [r_aux1 : r_aux1+3)  : [b1, gamma1, beta1]
      rows [r_w2   : r_w2+H1 )  : w2   (H1 x H2)
      rows [r_aux2 : r_aux2+3)  : [b2, gamma2, beta2]
      row   r_head              : w3   (H2,)
      row   r_head+1            : b3   (scalar at lane 0)
    All region starts are multiples of 8 -> sublane-aligned slices.
    """
    dp, h1, h2, r_w1, r_aux1, r_w2, r_aux2, r_head = layout
    x = x_ref[...].astype(jnp.float32)                         # (tb, dp)

    q_cols = []
    for i in range(n_q):  # n_q is tiny (2); whole slab is ~9 KB, VMEM-resident
        pw = p_ref[i]                                          # (R, W) fp32

        w1 = pw[r_w1:r_w1 + dp, 0:h1]                          # (dp, H1)
        aux1 = pw[r_aux1:r_aux1 + 3, 0:h1]                     # [b1; g1; be1]
        h = jnp.dot(x, w1, preferred_element_type=jnp.float32) + aux1[0:1, :]
        h = _ln_relu(h, aux1[1:2, :], aux1[2:3, :])

        w2 = pw[r_w2:r_w2 + h1, 0:h2]                          # (H1, H2)
        aux2 = pw[r_aux2:r_aux2 + 3, 0:h2]
        h = jnp.dot(h, w2, preferred_element_type=jnp.float32) + aux2[0:1, :]
        h = _ln_relu(h, aux2[1:2, :], aux2[2:3, :])

        # Output head: VPU multiply + XLU lane reduction (no 1-column MXU dot).
        head = pw[r_head:r_head + 2, 0:h2]                     # [w3; b3]
        q = jnp.sum(h * head[0:1, :], axis=-1, keepdims=True) + head[1:2, 0:1]
        q_cols.append(q)                                       # (tb, 1)

    if return_q_min:
        out_ref[...] = functools.reduce(jnp.minimum, q_cols).astype(out_ref.dtype)
    else:
        out_ref[...] = jnp.concatenate(q_cols, axis=-1).astype(out_ref.dtype)


def continuous_critic_forward(obs, act, params, *, use_target_net=False,
                              return_q_min=True, batch_tile=None):
    """Forward pass.

    batch_tile (multiple of 8, dividing B) is only worth setting on v7x at
    large B so the 'parallel' grid axis shards across its two TensorCores;
    leave None on v5e/v6e (single TC) where extra grid steps are pure overhead.
    """
    p = params["target"] if use_target_net else params["online"]
    packed = p["packed"]
    meta = params["meta"]
    n_q, R, W = packed.shape
    dp, h1, h2 = meta["dp"], meta["h1"], meta["h2"]
    layout = (dp, h1, h2, meta["r_w1"], meta["r_aux1"],
              meta["r_w2"], meta["r_aux2"], meta["r_head"])

    obs = obs.astype(jnp.float32)
    act = act.astype(jnp.float32)
    B = obs.shape[0]
    D = obs.shape[-1] + act.shape[-1]
    x = jnp.concatenate([obs, act], axis=-1)                   # one fused layer-1 input
    if dp > D:
        x = jnp.pad(x, ((0, 0), (0, dp - D)))                  # zero lanes; w1 rows padded too

    if batch_tile is not None:
        assert batch_tile % 8 == 0 and B % batch_tile == 0
        tb = batch_tile
    else:
        tb = B                                                 # single block by default
    grid = (pl.cdiv(B, tb),)

    n_out = 1 if return_q_min else n_q
    flops = 2 * B * n_q * (dp * h1 + h1 * h2 + h2)
    cost = pl.CostEstimate(
        flops=flops,
        transcendentals=2 * n_q * B,                           # rsqrt per row per LN
        bytes_accessed=4 * (x.size + packed.size + B * n_out))

    kernel = functools.partial(_critic_kernel, n_q=n_q, layout=layout,
                               return_q_min=return_q_min)

    out = pl.pallas_call(
        kernel,
        out_shape=jax.ShapeDtypeStruct((B, n_out), jnp.float32),
        grid_spec=pltpu.PrefetchScalarGridSpec(
            num_scalar_prefetch=0,
            grid=grid,
            in_specs=[
                pl.BlockSpec((tb, dp), lambda b: (b, 0)),      # x = [obs | act] (padded)
                pl.BlockSpec((n_q, R, W), lambda b: (0, 0, 0)),  # packed weights, DMA'd once
            ],
            out_specs=pl.BlockSpec((tb, n_out), lambda b: (b, 0)),
        ),
        compiler_params=pltpu.CompilerParams(
            dimension_semantics=("parallel",)),                # batch axis only
        cost_estimate=cost,
    )(x, packed)
    return out


def _orthogonal(key, shape, gain=1.0):
    """Deterministic orthogonal init (mirrors utils.orthogonal_init intent)."""
    rows, cols = shape
    n = max(rows, cols)
    a = jax.random.normal(key, (n, n), dtype=jnp.float32)
    q, r = jnp.linalg.qr(a)
    q = q * jnp.sign(jnp.diag(r))
    return gain * q[:rows, :cols]


def init_params(key, obs_dim, act_dim, hidden_dims=(32, 32), n_q_nets=2):
    D = obs_dim + act_dim
    H1, H2 = hidden_dims
    W = max(H1, H2)
    dp = _round_up(D, 8)
    h1p = _round_up(H1, 8)
    r_w1, r_aux1 = 0, dp
    r_w2 = dp + 8
    r_aux2 = r_w2 + h1p
    r_head = r_aux2 + 8
    R = r_head + 8

    keys = jax.random.split(key, n_q_nets * 3)
    packed = jnp.zeros((n_q_nets, R, W), jnp.float32)
    for i in range(n_q_nets):
        w1 = _orthogonal(keys[3 * i + 0], (D, H1))
        w2 = _orthogonal(keys[3 * i + 1], (H1, H2))
        w3 = _orthogonal(keys[3 * i + 2], (H2, 1))
        packed = packed.at[i, r_w1:r_w1 + D, 0:H1].set(w1)
        packed = packed.at[i, r_aux1 + 1, 0:H1].set(1.0)       # ln1 gamma (b1/beta1 = 0)
        packed = packed.at[i, r_w2:r_w2 + H1, 0:H2].set(w2)
        packed = packed.at[i, r_aux2 + 1, 0:H2].set(1.0)       # ln2 gamma
        packed = packed.at[i, r_head, 0:H2].set(w3[:, 0])      # output weight row
        # b3 (row r_head+1) stays zero.

    online = {"packed": packed}
    # target_q_nets.load_state_dict(q_nets.state_dict()) -> identical copies
    target = jax.tree_util.tree_map(lambda a: a, online)
    meta = {"dp": dp, "h1": H1, "h2": H2, "r_w1": r_w1, "r_aux1": r_aux1,
            "r_w2": r_w2, "r_aux2": r_aux2, "r_head": r_head}
    return {"online": online, "target": target, "meta": meta}


def _reference_forward(obs, act, packed, meta):
    """Plain-JAX reference (two-pass LayerNorm, PyTorch ordering)."""
    dp, h1, h2 = meta["dp"], meta["h1"], meta["h2"]
    x = jnp.concatenate([obs, act], axis=-1).astype(jnp.float32)
    if dp > x.shape[-1]:
        x = jnp.pad(x, ((0, 0), (0, dp - x.shape[-1])))
    qs = []
    for i in range(packed.shape[0]):
        w1 = packed[i, meta["r_w1"]:meta["r_w1"] + dp, 0:h1]
        b1, g1, be1 = (packed[i, meta["r_aux1"] + j, 0:h1] for j in range(3))
        h = x @ w1 + b1
        mu = h.mean(-1, keepdims=True)
        var = ((h - mu) ** 2).mean(-1, keepdims=True)
        h = jnp.maximum((h - mu) / jnp.sqrt(var + LN_EPS) * g1 + be1, 0.0)

        w2 = packed[i, meta["r_w2"]:meta["r_w2"] + h1, 0:h2]
        b2, g2, be2 = (packed[i, meta["r_aux2"] + j, 0:h2] for j in range(3))
        h = h @ w2 + b2
        mu = h.mean(-1, keepdims=True)
        var = ((h - mu) ** 2).mean(-1, keepdims=True)
        h = jnp.maximum((h - mu) / jnp.sqrt(var + LN_EPS) * g2 + be2, 0.0)

        w3 = packed[i, meta["r_head"], 0:h2]
        b3 = packed[i, meta["r_head"] + 1, 0]
        qs.append(h @ w3[:, None] + b3)
    return jnp.concatenate(qs, axis=-1)                        # (B, n_q)


if __name__ == "__main__":
    key = jax.random.PRNGKey(0)
    k_obs, k_act, k_par = jax.random.split(key, 3)

    B, OBS_DIM, ACT_DIM = 8, 12, 4
    HIDDEN = (32, 32)
    N_Q = 2

    obs = jax.random.normal(k_obs, (B, OBS_DIM), dtype=jnp.float32)
    act = jax.random.normal(k_act, (B, ACT_DIM), dtype=jnp.float32)
    params = init_params(k_par, OBS_DIM, ACT_DIM, hidden_dims=HIDDEN, n_q_nets=N_Q)

    q_min = jax.block_until_ready(continuous_critic_forward(obs, act, params))
    q_all = jax.block_until_ready(
        continuous_critic_forward(obs, act, params, return_q_min=False))
    q_min_t = jax.block_until_ready(
        continuous_critic_forward(obs, act, params, use_target_net=True))

    ref_all = _reference_forward(obs, act, params["online"]["packed"], params["meta"])
    ref_min = ref_all.min(axis=-1, keepdims=True)

    assert q_min.shape == (B, 1), q_min.shape
    assert q_all.shape == (B, N_Q), q_all.shape
    assert jnp.allclose(q_all, ref_all, atol=1e-4, rtol=1e-4), (q_all, ref_all)
    assert jnp.allclose(q_min, ref_min, atol=1e-4, rtol=1e-4), (q_min, ref_min)
    assert jnp.allclose(q_min_t, ref_min, atol=1e-4, rtol=1e-4), (q_min_t, ref_min)

    print("KERNEL_OK")
</pallas_src>

<mosaic_0001>
module attributes {stable_mosaic.version = 11 : i64} {
  func.func @_critic_kernel(%arg0: i32, %arg1: memref<8x16xf32, #tpu.memory_space<vmem>>, %arg2: memref<2x72x32xf32, #tpu.memory_space<vmem>>, %arg3: memref<8x1xf32, #tpu.memory_space<vmem>>) attributes {dimension_semantics = [#tpu.dimension_semantics<parallel>], iteration_bounds = array<i64: 1>, scalar_prefetch = 0 : i64, scratch_operands = 0 : i64, tpu.core_type = #tpu.core_type<tc>, window_params = [{transform_indices = @transform_0, window_bounds = array<i64: 8, 16>}, {pipeline_mode = #tpu.pipeline_mode<synchronous>, transform_indices = @transform_1, window_bounds = array<i64: 2, 72, 32>}, {transform_indices = @transform_2, window_bounds = array<i64: 8, 1>}]} {
    %c0 = arith.constant 0 : index
    %c0_0 = arith.constant 0 : index
    %0 = vector.load %arg1[%c0, %c0_0] : memref<8x16xf32, #tpu.memory_space<vmem>>, vector<8x16xf32>
    %c0_1 = arith.constant 0 : index
    %c0_2 = arith.constant 0 : index
    %c0_3 = arith.constant 0 : index
    %1 = vector.load %arg2[%c0_1, %c0_2, %c0_3] : memref<2x72x32xf32, #tpu.memory_space<vmem>>, vector<1x72x32xf32>
    %2 = vector.shape_cast %1 : vector<1x72x32xf32> to vector<72x32xf32>
    %3 = vector.extract_strided_slice %2 {offsets = [0, 0], sizes = [16, 32], strides = [1, 1]} : vector<72x32xf32> to vector<16x32xf32>
    %4 = vector.extract_strided_slice %2 {offsets = [16, 0], sizes = [3, 32], strides = [1, 1]} : vector<72x32xf32> to vector<3x32xf32>
    %cst = arith.constant dense<0.000000e+00> : vector<8x32xf32>
    %5 = tpu.matmul %0, %3, %cst {dimension_numbers = #tpu.dot_dimension_numbers<[1], [0], [0], [1], [0, 0, 1, 1], [], []>} : vector<8x16xf32>, vector<16x32xf32>, vector<8x32xf32> -> vector<8x32xf32>
    %6 = vector.extract_strided_slice %4 {offsets = [0, 0], sizes = [1, 32], strides = [1, 1]} : vector<3x32xf32> to vector<1x32xf32>
    %7 = vector.broadcast %6 : vector<1x32xf32> to vector<8x32xf32>
    %8 = arith.addf %5, %7 : vector<8x32xf32>
    %9 = vector.extract_strided_slice %4 {offsets = [1, 0], sizes = [1, 32], strides = [1, 1]} : vector<3x32xf32> to vector<1x32xf32>
    %10 = vector.extract_strided_slice %4 {offsets = [2, 0], sizes = [1, 32], strides = [1, 1]} : vector<3x32xf32> to vector<1x32xf32>
    %cst_4 = arith.constant dense<0.000000e+00> : vector<8xf32>
    %11 = vector.multi_reduction <add>, %8, %cst_4 [1] : vector<8x32xf32> to vector<8xf32>
    %12 = vector.shape_cast %11 : vector<8xf32> to vector<8x1xf32>
    %cst_5 = arith.constant 3.200000e+01 : f32
    %13 = vector.broadcast %cst_5 : f32 to vector<8x1xf32>
    %14 = arith.divf %12, %13 : vector<8x1xf32>
    %15 = vector.broadcast %14 : vector<8x1xf32> to vector<8x32xf32>
    %16 = arith.subf %8, %15 : vector<8x32xf32>
    %17 = arith.mulf %16, %16 : vector<8x32xf32>
    %cst_6 = arith.constant dense<0.000000e+00> : vector<8xf32>
    %18 = vector.multi_reduction <add>, %17, %cst_6 [1] : vector<8x32xf32> to vector<8xf32>
    %19 = vector.shape_cast %18 : vector<8xf32> to vector<8x1xf32>
    %cst_7 = arith.constant 3.200000e+01 : f32
    %20 = vector.broadcast %cst_7 : f32 to vector<8x1xf32>
    %21 = arith.divf %19, %20 : vector<8x1xf32>
    %cst_8 = arith.constant 9.99999974E-6 : f32
    %22 = vector.broadcast %cst_8 : f32 to vector<8x1xf32>
    %23 = arith.addf %21, %22 : vector<8x1xf32>
    %24 = math.rsqrt %23 : vector<8x1xf32>
    %25 = vector.broadcast %24 : vector<8x1xf32> to vector<8x32xf32>
    %26 = arith.mulf %16, %25 : vector<8x32xf32>
    %27 = vector.broadcast %9 : vector<1x32xf32> to vector<8x32xf32>
    %28 = arith.mulf %26, %27 : vector<8x32xf32>
    %29 = vector.broadcast %10 : vector<1x32xf32> to vector<8x32xf32>
    %30 = arith.addf %28, %29 : vector<8x32xf32>
    %cst_9 = arith.constant 0.000000e+00 : f32
    %31 = vector.broadcast %cst_9 : f32 to vector<8x32xf32>
    %32 = arith.maximumf %30, %31 : vector<8x32xf32>
    %33 = vector.extract_strided_slice %2 {offsets = [24, 0], sizes = [32, 32], strides = [1, 1]} : vector<72x32xf32> to vector<32x32xf32>
    %34 = vector.extract_strided_slice %2 {offsets = [56, 0], sizes = [3, 32], strides = [1, 1]} : vector<72x32xf32> to vector<3x32xf32>
    %cst_10 = arith.constant dense<0.000000e+00> : vector<8x32xf32>
    %35 = tpu.matmul %32, %33, %cst_10 {dimension_numbers = #tpu.dot_dimension_numbers<[1], [0], [0], [1], [0, 0, 1, 1], [], []>} : vector<8x32xf32>, vector<32x32xf32>, vector<8x32xf32> -> vector<8x32xf32>
    %36 = vector.extract_strided_slice %34 {offsets = [0, 0], sizes = [1, 32], strides = [1, 1]} : vector<3x32xf32> to vector<1x32xf32>
    %37 = vector.broadcast %36 : vector<1x32xf32> to vector<8x32xf32>
    %38 = arith.addf %35, %37 : vector<8x32xf32>
    %39 = vector.extract_strided_slice %34 {offsets = [1, 0], sizes = [1, 32], strides = [1, 1]} : vector<3x32xf32> to vector<1x32xf32>
    %40 = vector.extract_strided_slice %34 {offsets = [2, 0], sizes = [1, 32], strides = [1, 1]} : vector<3x32xf32> to vector<1x32xf32>
    %cst_11 = arith.constant dense<0.000000e+00> : vector<8xf32>
    %41 = vector.multi_reduction <add>, %38, %cst_11 [1] : vector<8x32xf32> to vector<8xf32>
    %42 = vector.shape_cast %41 : vector<8xf32> to vector<8x1xf32>
    %cst_12 = arith.constant 3.200000e+01 : f32
    %43 = vector.broadcast %cst_12 : f32 to vector<8x1xf32>
    %44 = arith.divf %42, %43 : vector<8x1xf32>
    %45 = vector.broadcast %44 : vector<8x1xf32> to vector<8x32xf32>
    %46 = arith.subf %38, %45 : vector<8x32xf32>
    %47 = arith.mulf %46, %46 : vector<8x32xf32>
    %cst_13 = arith.constant dense<0.000000e+00> : vector<8xf32>
    %48 = vector.multi_reduction <add>, %47, %cst_13 [1] : vector<8x32xf32> to vector<8xf32>
    %49 = vector.shape_cast %48 : vector<8xf32> to vector<8x1xf32>
    %cst_14 = arith.constant 3.200000e+01 : f32
    %50 = vector.broadcast %cst_14 : f32 to vector<8x1xf32>
    %51 = arith.divf %49, %50 : vector<8x1xf32>
    %cst_15 = arith.constant 9.99999974E-6 : f32
    %52 = vector.broadcast %cst_15 : f32 to vector<8x1xf32>
    %53 = arith.addf %51, %52 : vector<8x1xf32>
    %54 = math.rsqrt %53 : vector<8x1xf32>
    %55 = vector.broadcast %54 : vector<8x1xf32> to vector<8x32xf32>
    %56 = arith.mulf %46, %55 : vector<8x32xf32>
    %57 = vector.broadcast %39 : vector<1x32xf32> to vector<8x32xf32>
    %58 = arith.mulf %56, %57 : vector<8x32xf32>
    %59 = vector.broadcast %40 : vector<1x32xf32> to vector<8x32xf32>
    %60 = arith.addf %58, %59 : vector<8x32xf32>
    %cst_16 = arith.constant 0.000000e+00 : f32
    %61 = vector.broadcast %cst_16 : f32 to vector<8x32xf32>
    %62 = arith.maximumf %60, %61 : vector<8x32xf32>
    %63 = vector.extract_strided_slice %2 {offsets = [64, 0], sizes = [2, 32], strides = [1, 1]} : vector<72x32xf32> to vector<2x32xf32>
    %64 = vector.extract_strided_slice %63 {offsets = [0, 0], sizes = [1, 32], strides = [1, 1]} : vector<2x32xf32> to vector<1x32xf32>
    %65 = vector.broadcast %64 : vector<1x32xf32> to vector<8x32xf32>
    %66 = arith.mulf %62, %65 : vector<8x32xf32>
    %cst_17 = arith.constant dense<0.000000e+00> : vector<8xf32>
    %67 = vector.multi_reduction <add>, %66, %cst_17 [1] : vector<8x32xf32> to vector<8xf32>
    %68 = vector.shape_cast %67 : vector<8xf32> to vector<8x1xf32>
    %69 = vector.extract_strided_slice %63 {offsets = [1, 0], sizes = [1, 1], strides = [1, 1]} : vector<2x32xf32> to vector<1x1xf32>
    %70 = vector.broadcast %69 : vector<1x1xf32> to vector<8x1xf32>
    %71 = arith.addf %68, %70 : vector<8x1xf32>
    %c1 = arith.constant 1 : index
    %c0_18 = arith.constant 0 : index
    %c0_19 = arith.constant 0 : index
    %72 = vector.load %arg2[%c1, %c0_18, %c0_19] : memref<2x72x32xf32, #tpu.memory_space<vmem>>, vector<1x72x32xf32>
    %73 = vector.shape_cast %72 : vector<1x72x32xf32> to vector<72x32xf32>
    %74 = vector.extract_strided_slice %73 {offsets = [0, 0], sizes = [16, 32], strides = [1, 1]} : vector<72x32xf32> to vector<16x32xf32>
    %75 = vector.extract_strided_slice %73 {offsets = [16, 0], sizes = [3, 32], strides = [1, 1]} : vector<72x32xf32> to vector<3x32xf32>
    %cst_20 = arith.constant dense<0.000000e+00> : vector<8x32xf32>
    %76 = tpu.matmul %0, %74, %cst_20 {dimension_numbers = #tpu.dot_dimension_numbers<[1], [0], [0], [1], [0, 0, 1, 1], [], []>} : vector<8x16xf32>, vector<16x32xf32>, vector<8x32xf32> -> vector<8x32xf32>
    %77 = vector.extract_strided_slice %75 {offsets = [0, 0], sizes = [1, 32], strides = [1, 1]} : vector<3x32xf32> to vector<1x32xf32>
    %78 = vector.broadcast %77 : vector<1x32xf32> to vector<8x32xf32>
    %79 = arith.addf %76, %78 : vector<8x32xf32>
    %80 = vector.extract_strided_slice %75 {offsets = [1, 0], sizes = [1, 32], strides = [1, 1]} : vector<3x32xf32> to vector<1x32xf32>
    %81 = vector.extract_strided_slice %75 {offsets = [2, 0], sizes = [1, 32], strides = [1, 1]} : vector<3x32xf32> to vector<1x32xf32>
    %cst_21 = arith.constant dense<0.000000e+00> : vector<8xf32>
    %82 = vector.multi_reduction <add>, %79, %cst_21 [1] : vector<8x32xf32> to vector<8xf32>
    %83 = vector.shape_cast %82 : vector<8xf32> to vector<8x1xf32>
    %cst_22 = arith.constant 3.200000e+01 : f32
    %84 = vector.broadcast %cst_22 : f32 to vector<8x1xf32>
    %85 = arith.divf %83, %84 : vector<8x1xf32>
    %86 = vector.broadcast %85 : vector<8x1xf32> to vector<8x32xf32>
    %87 = arith.subf %79, %86 : vector<8x32xf32>
    %88 = arith.mulf %87, %87 : vector<8x32xf32>
    %cst_23 = arith.constant dense<0.000000e+00> : vector<8xf32>
    %89 = vector.multi_reduction <add>, %88, %cst_23 [1] : vector<8x32xf32> to vector<8xf32>
    %90 = vector.shape_cast %89 : vector<8xf32> to vector<8x1xf32>
    %cst_24 = arith.constant 3.200000e+01 : f32
    %91 = vector.broadcast %cst_24 : f32 to vector<8x1xf32>
    %92 = arith.divf %90, %91 : vector<8x1xf32>
    %cst_25 = arith.constant 9.99999974E-6 : f32
    %93 = vector.broadcast %cst_25 : f32 to vector<8x1xf32>
    %94 = arith.addf %92, %93 : vector<8x1xf32>
    %95 = math.rsqrt %94 : vector<8x1xf32>
    %96 = vector.broadcast %95 : vector<8x1xf32> to vector<8x32xf32>
    %97 = arith.mulf %87, %96 : vector<8x32xf32>
    %98 = vector.broadcast %80 : vector<1x32xf32> to vector<8x32xf32>
    %99 = arith.mulf %97, %98 : vector<8x32xf32>
    %100 = vector.broadcast %81 : vector<1x32xf32> to vector<8x32xf32>
    %101 = arith.addf %99, %100 : vector<8x32xf32>
    %cst_26 = arith.constant 0.000000e+00 : f32
    %102 = vector.broadcast %cst_26 : f32 to vector<8x32xf32>
    %103 = arith.maximumf %101, %102 : vector<8x32xf32>
    %104 = vector.extract_strided_slice %73 {offsets = [24, 0], sizes = [32, 32], strides = [1, 1]} : vector<72x32xf32> to vector<32x32xf32>
    %105 = vector.extract_strided_slice %73 {offsets = [56, 0], sizes = [3, 32], strides = [1, 1]} : vector<72x32xf32> to vector<3x32xf32>
    %cst_27 = arith.constant dense<0.000000e+00> : vector<8x32xf32>
    %106 = tpu.matmul %103, %104, %cst_27 {dimension_numbers = #tpu.dot_dimension_numbers<[1], [0], [0], [1], [0, 0, 1, 1], [], []>} : vector<8x32xf32>, vector<32x32xf32>, vector<8x32xf32> -> vector<8x32xf32>
    %107 = vector.extract_strided_slice %105 {offsets = [0, 0], sizes = [1, 32], strides = [1, 1]} : vector<3x32xf32> to vector<1x32xf32>
    %108 = vector.broadcast %107 : vector<1x32xf32> to vector<8x32xf32>
    %109 = arith.addf %106, %108 : vector<8x32xf32>
    %110 = vector.extract_strided_slice %105 {offsets = [1, 0], sizes = [1, 32], strides = [1, 1]} : vector<3x32xf32> to vector<1x32xf32>
    %111 = vector.extract_strided_slice %105 {offsets = [2, 0], sizes = [1, 32], strides = [1, 1]} : vector<3x32xf32> to vector<1x32xf32>
    %cst_28 = arith.constant dense<0.000000e+00> : vector<8xf32>
    %112 = vector.multi_reduction <add>, %109, %cst_28 [1] : vector<8x32xf32> to vector<8xf32>
    %113 = vector.shape_cast %112 : vector<8xf32> to vector<8x1xf32>
    %cst_29 = arith.constant 3.200000e+01 : f32
    %114 = vector.broadcast %cst_29 : f32 to vector<8x1xf32>
    %115 = arith.divf %113, %114 : vector<8x1xf32>
    %116 = vector.broadcast %115 : vector<8x1xf32> to vector<8x32xf32>
    %117 = arith.subf %109, %116 : vector<8x32xf32>
    %118 = arith.mulf %117, %117 : vector<8x32xf32>
    %cst_30 = arith.constant dense<0.000000e+00> : vector<8xf32>
    %119 = vector.multi_reduction <add>, %118, %cst_30 [1] : vector<8x32xf32> to vector<8xf32>
    %120 = vector.shape_cast %119 : vector<8xf32> to vector<8x1xf32>
    %cst_31 = arith.constant 3.200000e+01 : f32
    %121 = vector.broadcast %cst_31 : f32 to vector<8x1xf32>
    %122 = arith.divf %120, %121 : vector<8x1xf32>
    %cst_32 = arith.constant 9.99999974E-6 : f32
    %123 = vector.broadcast %cst_32 : f32 to vector<8x1xf32>
    %124 = arith.addf %122, %123 : vector<8x1xf32>
    %125 = math.rsqrt %124 : vector<8x1xf32>
    %126 = vector.broadcast %125 : vector<8x1xf32> to vector<8x32xf32>
    %127 = arith.mulf %117, %126 : vector<8x32xf32>
    %128 = vector.broadcast %110 : vector<1x32xf32> to vector<8x32xf32>
    %129 = arith.mulf %127, %128 : vector<8x32xf32>
    %130 = vector.broadcast %111 : vector<1x32xf32> to vector<8x32xf32>
    %131 = arith.addf %129, %130 : vector<8x32xf32>
    %cst_33 = arith.constant 0.000000e+00 : f32
    %132 = vector.broadcast %cst_33 : f32 to vector<8x32xf32>
    %133 = arith.maximumf %131, %132 : vector<8x32xf32>
    %134 = vector.extract_strided_slice %73 {offsets = [64, 0], sizes = [2, 32], strides = [1, 1]} : vector<72x32xf32> to vector<2x32xf32>
    %135 = vector.extract_strided_slice %134 {offsets = [0, 0], sizes = [1, 32], strides = [1, 1]} : vector<2x32xf32> to vector<1x32xf32>
    %136 = vector.broadcast %135 : vector<1x32xf32> to vector<8x32xf32>
    %137 = arith.mulf %133, %136 : vector<8x32xf32>
    %cst_34 = arith.constant dense<0.000000e+00> : vector<8xf32>
    %138 = vector.multi_reduction <add>, %137, %cst_34 [1] : vector<8x32xf32> to vector<8xf32>
    %139 = vector.shape_cast %138 : vector<8xf32> to vector<8x1xf32>
    %140 = vector.extract_strided_slice %134 {offsets = [1, 0], sizes = [1, 1], strides = [1, 1]} : vector<2x32xf32> to vector<1x1xf32>
    %141 = vector.broadcast %140 : vector<1x1xf32> to vector<8x1xf32>
    %142 = arith.addf %139, %141 : vector<8x1xf32>
    %143 = arith.minimumf %71, %142 : vector<8x1xf32>
    %c0_35 = arith.constant 0 : index
    %c0_36 = arith.constant 0 : index
    %144 = vector.load %arg3[%c0_35, %c0_36] : memref<8x1xf32, #tpu.memory_space<vmem>>, vector<8x1xf32>
    tpu.vector_store %arg3[%c0_35, %c0_36], %143 {strides = array<i32>} : memref<8x1xf32, #tpu.memory_space<vmem>>, vector<8x1xf32>,
    return
  }
  func.func @transform_0(%arg0: i32) -> (i32, i32) {
    %c0_i32 = arith.constant 0 : i32
    %c0_i32_0 = arith.constant 0 : i32
    return %arg0, %c0_i32 : i32, i32
  }
  func.func @transform_1(%arg0: i32) -> (i32, i32, i32) {
    %c0_i32 = arith.constant 0 : i32
    %c0_i32_0 = arith.constant 0 : i32
    %c0_i32_1 = arith.constant 0 : i32
    %c0_i32_2 = arith.constant 0 : i32
    return %c0_i32, %c0_i32_0, %c0_i32_1 : i32, i32, i32
  }
  func.func @transform_2(%arg0: i32) -> (i32, i32) {
    %c0_i32 = arith.constant 0 : i32
    %c0_i32_0 = arith.constant 0 : i32
    return %arg0, %c0_i32 : i32, i32
  }
}

</mosaic_0001>

<llo_original>
// kernel: tpu_custom_call.1
$region0: #{tpu_custom_call.1}
  #allocation0 [shape = 'u32[]', space=smem, size = 0x4, offset = 0x4, fixed_abs, tag = 'smem constant byte address 0x4 - core index']
  #allocation1 [shape = 'u32[144,128]{1,0:T(1,128)}', space=vmem, size = 0x12000, scoped, tag = 'internal scratch']
  %s0 = inlined_call_operand.vmem [shape: f32[8,16], index: 0, kind: input, shape index: {}]
  %s1 = inlined_call_operand.vmem [shape: f32[2,72,32], index: 1, kind: input, shape index: {}]
  %s2 = inlined_call_operand.vmem [shape: f32[8,1], index: 2, kind: output, shape index: {}]
  %s3 = sld [smem:[#allocation0]]
  $region18: #{tpu_custom_call.1} parent=0
    _
  %s5 = ssub.s32 1, %s3
  %s6 = scalar_select 0, %s5, %s3
  // Predicated region
  $region2: #{tpu_custom_call.1} parent=0 // pred_check
    _
  $region3: #{tpu_custom_call.1} parent=0 // pred_check_branch
    %8 = sbr.rel (0) target = $region5
  $region4: #{tpu_custom_call.1} parent=0 // pred_region
    _
  $region5: #{tpu_custom_call.1} parent=0 // pred_fallthru
    _
  // Predicated region
  $region6: #{tpu_custom_call.1} parent=0 // pred_check
    _
  $region7: #{tpu_custom_call.1} parent=0 // pred_check_branch
    %10 = sbr.rel (0) target = $region9
  $region8: #{tpu_custom_call.1} parent=0 // pred_region
    _
  $region9: #{tpu_custom_call.1} parent=0 // pred_fallthru
    _
  %v11 = vld [vmem:[%s0] sm:$0xff]
  %v12 = vld [vmem:[%s1] sm:$0xff]
  %v13 = vld [vmem:[%s1 + $0x8] sm:$0xff]
  %v14 = vld [vmem:[%s1 + $0x10] sm:$0xff]
  %v15 = vld [vmem:[%s1 + $0x18] sm:$0xff]
  %v16 = vld [vmem:[%s1 + $0x20] sm:$0xff]
  %v17 = vld [vmem:[%s1 + $0x28] sm:$0xff]
  %v18 = vld [vmem:[%s1 + $0x30] sm:$0xff]
  %v19 = vld [vmem:[%s1 + $0x38] sm:$0xff]
  %v20 = vld [vmem:[%s1 + $0x40] sm:$0xff]
  %v21 = vlaneseq
  %v22 = vshrl.u32 %v21, 7
  %v23 = vsub.s32 0, %v22
  %v24 = vrot.slane %v14, %v23
  %vm25 = vcmask 130048
  %v27 = vsel %vm25, %v11, 0
  %29 = vmatprep.subr.mxu0 0.0
  %30 = vmatpush1.msra.mxu0 0.0
  %31 = vmatprep.subr.mxu0 0.0
  %32 = vmatpush1.msra.mxu0 0.0
  %33 = vmatprep.subr.mxu0 0.0
  %34 = vmatpush1.msra.mxu0 0.0
  %35 = vmatprep.subr.mxu0 0.0
  %36 = vmatpush1.msra.mxu0 0.0
  %37 = vmatprep.subr.mxu0 0.0
  %38 = vmatpush1.msra.mxu0 0.0
  %39 = vmatprep.subr.mxu0 0.0
  %40 = vmatpush1.msra.mxu0 0.0
  %41 = vmatprep.subr.mxu0 0.0
  %42 = vmatpush1.msra.mxu0 0.0
  %43 = vmatprep.subr.mxu0 0.0
  %44 = vmatpush1.msra.mxu0 0.0
  %45 = vmatprep.subr.mxu0 0.0
  %46 = vmatpush1.msra.mxu0 0.0
  %47 = vmatprep.subr.mxu0 0.0
  %48 = vmatpush1.msra.mxu0 0.0
  %49 = vmatprep.subr.mxu0 0.0
  %50 = vmatpush1.msra.mxu0 0.0
  %51 = vmatprep.subr.mxu0 0.0
  %52 = vmatpush1.msra.mxu0 0.0
  %53 = vmatprep.subr.mxu0 0.0
  %54 = vmatpush1.msra.mxu0 0.0
  %55 = vmatprep.subr.mxu0 0.0
  %56 = vmatpush1.msra.mxu0 0.0
  %57 = vmatprep.subr.mxu0 0.0
  %58 = vmatpush1.msra.mxu0 %v13
  %59 = vmatprep.subr.mxu0 0.0
  %60 = vmatpush1.msra.mxu0 %v12
  %61 = vmatprep.subr.mxu0 0.0
  %62 = vmatpush2.msra.mxu0 0.0
  %63 = vmatprep.subr.mxu0 0.0
  %64 = vmatpush2.msra.mxu0 0.0
  %65 = vmatprep.subr.mxu0 0.0
  %66 = vmatpush2.msra.mxu0 0.0
  %67 = vmatprep.subr.mxu0 0.0
  %68 = vmatpush2.msra.mxu0 0.0
  %69 = vmatprep.subr.mxu0 0.0
  %70 = vmatpush2.msra.mxu0 0.0
  %71 = vmatprep.subr.mxu0 0.0
  %72 = vmatpush2.msra.mxu0 0.0
  %73 = vmatprep.subr.mxu0 0.0
  %74 = vmatpush2.msra.mxu0 0.0
  %75 = vmatprep.subr.mxu0 0.0
  %76 = vmatpush2.msra.mxu0 0.0
  %77 = vmatprep.subr.mxu0 0.0
  %78 = vmatpush2.msra.mxu0 0.0
  %79 = vmatprep.subr.mxu0 0.0
  %80 = vmatpush2.msra.mxu0 0.0
  %81 = vmatprep.subr.mxu0 0.0
  %82 = vmatpush2.msra.mxu0 0.0
  %83 = vmatprep.subr.mxu0 0.0
  %84 = vmatpush2.msra.mxu0 0.0
  %85 = vmatprep.subr.mxu0 0.0
  %86 = vmatpush2.msra.mxu0 0.0
  %87 = vmatprep.subr.mxu0 0.0
  %88 = vmatpush2.msra.mxu0 0.0
  %89 = vmatprep.subr.mxu0 0.0
  %90 = vmatpush2.msra.mxu0 0.0
  %91 = vmatprep.subr.mxu0 0.0
  %92 = vmatpush2.msra.mxu0 0.0
  %93 = vmatprep.mubr.f32.mxu0 0.0
  %94 = vmatmul.mubr.f32.gmra.mxu0 %v27
  %v95 = vpop.f32.mrf.mxu0
  %v96 = vadd.f32 %v24, %v95
  %v97 = vpop.f32.mrf.mxu0
  %98 = vdwg.mxu0
  %vm99 = vcmask 261120
  %v100 = vsel %vm99, %v96, 0.0
  %101 = vadd.xlane.f32.xlu0 %v100
  %v102 = vpop.xlane.xlu0 %101
  %v103 = vrcp.pop 32.0
  %v104 = vmul.f32 %v102, %v103
  %v105 = vsub.f32 %v96, %v104
  %v106 = vmul.f32 %v105, %v105
  %v107 = vsel %vm99, %v106, 0.0
  %108 = vadd.xlane.f32.xlu0 %v107
  %v109 = vpop.xlane.xlu0 %108
  %v110 = vmul.f32 %v109, %v103
  %v111 = vadd.f32 %v110, 1e-05
  %v112 = vrsqrt.pop %v111
  %v113 = vmul.f32 %v105, %v112
  %v114 = vlaneseq
  %v115 = vshrl.u32 %v114, 7
  %v116 = vsub.s32 1, %v115
  %v117 = vrot.slane %v14, %v116
  %v118 = vmul.f32 %v113, %v117
  %v119 = vlaneseq
  %v120 = vshrl.u32 %v119, 7
  %v121 = vsub.s32 2, %v120
  %v122 = vrot.slane %v14, %v121
  %v123 = vadd.f32 %v118, %v122
  %v124 = vmax.f32 %v123, 0.0
  %v125 = vlaneseq
  %v126 = vshrl.u32 %v125, 7
  %v127 = vsub.s32 0, %v126
  %v128 = vrot.slane %v19, %v127
  %v130 = vsel %vm99, %v124, 0
  %132 = vmatprep.subr.mxu0 0.0
  %133 = vmatpush1.msra.mxu0 0.0
  %134 = vmatprep.subr.mxu0 0.0
  %135 = vmatpush1.msra.mxu0 0.0
  %136 = vmatprep.subr.mxu0 0.0
  %137 = vmatpush1.msra.mxu0 0.0
  %138 = vmatprep.subr.mxu0 0.0
  %139 = vmatpush1.msra.mxu0 0.0
  %140 = vmatprep.subr.mxu0 0.0
  %141 = vmatpush1.msra.mxu0 0.0
  %142 = vmatprep.subr.mxu0 0.0
  %143 = vmatpush1.msra.mxu0 0.0
  %144 = vmatprep.subr.mxu0 0.0
  %145 = vmatpush1.msra.mxu0 0.0
  %146 = vmatprep.subr.mxu0 0.0
  %147 = vmatpush1.msra.mxu0 0.0
  %148 = vmatprep.subr.mxu0 0.0
  %149 = vmatpush1.msra.mxu0 0.0
  %150 = vmatprep.subr.mxu0 0.0
  %151 = vmatpush1.msra.mxu0 0.0
  %152 = vmatprep.subr.mxu0 0.0
  %153 = vmatpush1.msra.mxu0 0.0
  %154 = vmatprep.subr.mxu0 0.0
  %155 = vmatpush1.msra.mxu0 0.0
  %156 = vmatprep.subr.mxu0 0.0
  %157 = vmatpush1.msra.mxu0 %v18
  %158 = vmatprep.subr.mxu0 0.0
  %159 = vmatpush1.msra.mxu0 %v17
  %160 = vmatprep.subr.mxu0 0.0
  %161 = vmatpush1.msra.mxu0 %v16
  %162 = vmatprep.subr.mxu0 0.0
  %163 = vmatpush1.msra.mxu0 %v15
  %164 = vmatprep.subr.mxu0 0.0
  %165 = vmatpush2.msra.mxu0 0.0
  %166 = vmatprep.subr.mxu0 0.0
  %167 = vmatpush2.msra.mxu0 0.0
  %168 = vmatprep.subr.mxu0 0.0
  %169 = vmatpush2.msra.mxu0 0.0
  %170 = vmatprep.subr.mxu0 0.0
  %171 = vmatpush2.msra.mxu0 0.0
  %172 = vmatprep.subr.mxu0 0.0
  %173 = vmatpush2.msra.mxu0 0.0
  %174 = vmatprep.subr.mxu0 0.0
  %175 = vmatpush2.msra.mxu0 0.0
  %176 = vmatprep.subr.mxu0 0.0
  %177 = vmatpush2.msra.mxu0 0.0
  %178 = vmatprep.subr.mxu0 0.0
  %179 = vmatpush2.msra.mxu0 0.0
  %180 = vmatprep.subr.mxu0 0.0
  %181 = vmatpush2.msra.mxu0 0.0
  %182 = vmatprep.subr.mxu0 0.0
  %183 = vmatpush2.msra.mxu0 0.0
  %184 = vmatprep.subr.mxu0 0.0
  %185 = vmatpush2.msra.mxu0 0.0
  %186 = vmatprep.subr.mxu0 0.0
  %187 = vmatpush2.msra.mxu0 0.0
  %188 = vmatprep.subr.mxu0 0.0
  %189 = vmatpush2.msra.mxu0 0.0
  %190 = vmatprep.subr.mxu0 0.0
  %191 = vmatpush2.msra.mxu0 0.0
  %192 = vmatprep.subr.mxu0 0.0
  %193 = vmatpush2.msra.mxu0 0.0
  %194 = vmatprep.subr.mxu0 0.0
  %195 = vmatpush2.msra.mxu0 0.0
  %196 = vmatprep.mubr.f32.mxu0 0.0
  %197 = vmatmul.mubr.f32.gmra.mxu0 %v130
  %v198 = vpop.f32.mrf.mxu0
  %v199 = vadd.f32 %v128, %v198
  %v200 = vpop.f32.mrf.mxu0
  %201 = vdwg.mxu0
  %v202 = vsel %vm99, %v199, 0.0
  %203 = vadd.xlane.f32.xlu0 %v202
  %v204 = vpop.xlane.xlu0 %203
  %v205 = vmul.f32 %v204, %v103
  %v206 = vsub.f32 %v199, %v205
  %v207 = vmul.f32 %v206, %v206
  %v208 = vsel %vm99, %v207, 0.0
  %209 = vadd.xlane.f32.xlu0 %v208
  %v210 = vpop.xlane.xlu0 %209
  %v211 = vmul.f32 %v210, %v103
  %v212 = vadd.f32 %v211, 1e-05
  %v213 = vrsqrt.pop %v212
  %v214 = vmul.f32 %v206, %v213
  %v215 = vlaneseq
  %v216 = vshrl.u32 %v215, 7
  %v217 = vsub.s32 1, %v216
  %v218 = vrot.slane %v19, %v217
  %v219 = vmul.f32 %v214, %v218
  %v220 = vlaneseq
  %v221 = vshrl.u32 %v220, 7
  %v222 = vsub.s32 2, %v221
  %v223 = vrot.slane %v19, %v222
  %v224 = vadd.f32 %v219, %v223
  %v225 = vmax.f32 %v224, 0.0
  %v226 = vlaneseq
  %v227 = vshrl.u32 %v226, 7
  %v228 = vsub.s32 0, %v227
  %v229 = vrot.slane %v20, %v228
  %v230 = vmul.f32 %v225, %v229
  %v231 = vsel %vm99, %v230, 0.0
  %232 = vadd.xlane.f32.xlu0 %v231
  %v233 = vpop.xlane.xlu0 %232
  %v234 = vlaneseq
  %v235 = vshrl.u32 %v234, 7
  %v236 = vsub.s32 1, %v235
  %v237 = vrot.slane %v20, %v236
  %v238 = vadd.f32 %v233, %v237
  %s239 = scalar_lea.vmem %s1, 72
  %v240 = vld [vmem:[%s239] sm:$0xff]
  %v241 = vld [vmem:[%s239 + $0x8] sm:$0xff]
  %v242 = vld [vmem:[%s239 + $0x10] sm:$0xff]
  %v243 = vld [vmem:[%s239 + $0x18] sm:$0xff]
  %v244 = vld [vmem:[%s239 + $0x20] sm:$0xff]
  %v245 = vld [vmem:[%s239 + $0x28] sm:$0xff]
  %v246 = vld [vmem:[%s239 + $0x30] sm:$0xff]
  %v247 = vld [vmem:[%s239 + $0x38] sm:$0xff]
  %v248 = vld [vmem:[%s239 + $0x40] sm:$0xff]
  %v249 = vlaneseq
  %v250 = vshrl.u32 %v249, 7
  %v251 = vsub.s32 0, %v250
  %v252 = vrot.slane %v242, %v251
  %253 = vmatprep.subr.mxu0 0.0
  %254 = vmatpush1.msra.mxu0 0.0
  %255 = vmatprep.subr.mxu0 0.0
  %256 = vmatpush1.msra.mxu0 0.0
  %257 = vmatprep.subr.mxu0 0.0
  %258 = vmatpush1.msra.mxu0 0.0
  %259 = vmatprep.subr.mxu0 0.0
  %260 = vmatpush1.msra.mxu0 0.0
  %261 = vmatprep.subr.mxu0 0.0
  %262 = vmatpush1.msra.mxu0 0.0
  %263 = vmatprep.subr.mxu0 0.0
  %264 = vmatpush1.msra.mxu0 0.0
  %265 = vmatprep.subr.mxu0 0.0
  %266 = vmatpush1.msra.mxu0 0.0
  %267 = vmatprep.subr.mxu0 0.0
  %268 = vmatpush1.msra.mxu0 0.0
  %269 = vmatprep.subr.mxu0 0.0
  %270 = vmatpush1.msra.mxu0 0.0
  %271 = vmatprep.subr.mxu0 0.0
  %272 = vmatpush1.msra.mxu0 0.0
  %273 = vmatprep.subr.mxu0 0.0
  %274 = vmatpush1.msra.mxu0 0.0
  %275 = vmatprep.subr.mxu0 0.0
  %276 = vmatpush1.msra.mxu0 0.0
  %277 = vmatprep.subr.mxu0 0.0
  %278 = vmatpush1.msra.mxu0 0.0
  %279 = vmatprep.subr.mxu0 0.0
  %280 = vmatpush1.msra.mxu0 0.0
  %281 = vmatprep.subr.mxu0 0.0
  %282 = vmatpush1.msra.mxu0 %v241
  %283 = vmatprep.subr.mxu0 0.0
  %284 = vmatpush1.msra.mxu0 %v240
  %285 = vmatprep.subr.mxu0 0.0
  %286 = vmatpush2.msra.mxu0 0.0
  %287 = vmatprep.subr.mxu0 0.0
  %288 = vmatpush2.msra.mxu0 0.0
  %289 = vmatprep.subr.mxu0 0.0
  %290 = vmatpush2.msra.mxu0 0.0
  %291 = vmatprep.subr.mxu0 0.0
  %292 = vmatpush2.msra.mxu0 0.0
  %293 = vmatprep.subr.mxu0 0.0
  %294 = vmatpush2.msra.mxu0 0.0
  %295 = vmatprep.subr.mxu0 0.0
  %296 = vmatpush2.msra.mxu0 0.0
  %297 = vmatprep.subr.mxu0 0.0
  %298 = vmatpush2.msra.mxu0 0.0
  %299 = vmatprep.subr.mxu0 0.0
  %300 = vmatpush2.msra.mxu0 0.0
  %301 = vmatprep.subr.mxu0 0.0
  %302 = vmatpush2.msra.mxu0 0.0
  %303 = vmatprep.subr.mxu0 0.0
  %304 = vmatpush2.msra.mxu0 0.0
  %305 = vmatprep.subr.mxu0 0.0
  %306 = vmatpush2.msra.mxu0 0.0
  %307 = vmatprep.subr.mxu0 0.0
  %308 = vmatpush2.msra.mxu0 0.0
  %309 = vmatprep.subr.mxu0 0.0
  %310 = vmatpush2.msra.mxu0 0.0
  %311 = vmatprep.subr.mxu0 0.0
  %312 = vmatpush2.msra.mxu0 0.0
  %313 = vmatprep.subr.mxu0 0.0
  %314 = vmatpush2.msra.mxu0 0.0
  %315 = vmatprep.subr.mxu0 0.0
  %316 = vmatpush2.msra.mxu0 0.0
  %317 = vmatprep.mubr.f32.mxu0 0.0
  %318 = vmatmul.mubr.f32.gmra.mxu0 %v27
  %v319 = vpop.f32.mrf.mxu0
  %v320 = vadd.f32 %v252, %v319
  %v321 = vpop.f32.mrf.mxu0
  %322 = vdwg.mxu0
  %v323 = vsel %vm99, %v320, 0.0
  %324 = vadd.xlane.f32.xlu0 %v323
  %v325 = vpop.xlane.xlu0 %324
  %v326 = vmul.f32 %v325, %v103
  %v327 = vsub.f32 %v320, %v326
  %v328 = vmul.f32 %v327, %v327
  %v329 = vsel %vm99, %v328, 0.0
  %330 = vadd.xlane.f32.xlu0 %v329
  %v331 = vpop.xlane.xlu0 %330
  %v332 = vmul.f32 %v331, %v103
  %v333 = vadd.f32 %v332, 1e-05
  %v334 = vrsqrt.pop %v333
  %v335 = vmul.f32 %v327, %v334
  %v336 = vlaneseq
  %v337 = vshrl.u32 %v336, 7
  %v338 = vsub.s32 1, %v337
  %v339 = vrot.slane %v242, %v338
  %v340 = vmul.f32 %v335, %v339
  %v341 = vlaneseq
  %v342 = vshrl.u32 %v341, 7
  %v343 = vsub.s32 2, %v342
  %v344 = vrot.slane %v242, %v343
  %v345 = vadd.f32 %v340, %v344
  %v346 = vmax.f32 %v345, 0.0
  %v347 = vlaneseq
  %v348 = vshrl.u32 %v347, 7
  %v349 = vsub.s32 0, %v348
  %v350 = vrot.slane %v247, %v349
  %v352 = vsel %vm99, %v346, 0
  %354 = vmatprep.subr.mxu0 0.0
  %355 = vmatpush1.msra.mxu0 0.0
  %356 = vmatprep.subr.mxu0 0.0
  %357 = vmatpush1.msra.mxu0 0.0
  %358 = vmatprep.subr.mxu0 0.0
  %359 = vmatpush1.msra.mxu0 0.0
  %360 = vmatprep.subr.mxu0 0.0
  %361 = vmatpush1.msra.mxu0 0.0
  %362 = vmatprep.subr.mxu0 0.0
  %363 = vmatpush1.msra.mxu0 0.0
  %364 = vmatprep.subr.mxu0 0.0
  %365 = vmatpush1.msra.mxu0 0.0
  %366 = vmatprep.subr.mxu0 0.0
  %367 = vmatpush1.msra.mxu0 0.0
  %368 = vmatprep.subr.mxu0 0.0
  %369 = vmatpush1.msra.mxu0 0.0
  %370 = vmatprep.subr.mxu0 0.0
  %371 = vmatpush1.msra.mxu0 0.0
  %372 = vmatprep.subr.mxu0 0.0
  %373 = vmatpush1.msra.mxu0 0.0
  %374 = vmatprep.subr.mxu0 0.0
  %375 = vmatpush1.msra.mxu0 0.0
  %376 = vmatprep.subr.mxu0 0.0
  %377 = vmatpush1.msra.mxu0 0.0
  %378 = vmatprep.subr.mxu0 0.0
  %379 = vmatpush1.msra.mxu0 %v246
  %380 = vmatprep.subr.mxu0 0.0
  %381 = vmatpush1.msra.mxu0 %v245
  %382 = vmatprep.subr.mxu0 0.0
  %383 = vmatpush1.msra.mxu0 %v244
  %384 = vmatprep.subr.mxu0 0.0
  %385 = vmatpush1.msra.mxu0 %v243
  %386 = vmatprep.subr.mxu0 0.0
  %387 = vmatpush2.msra.mxu0 0.0
  %388 = vmatprep.subr.mxu0 0.0
  %389 = vmatpush2.msra.mxu0 0.0
  %390 = vmatprep.subr.mxu0 0.0
  %391 = vmatpush2.msra.mxu0 0.0
  %392 = vmatprep.subr.mxu0 0.0
  %393 = vmatpush2.msra.mxu0 0.0
  %394 = vmatprep.subr.mxu0 0.0
  %395 = vmatpush2.msra.mxu0 0.0
  %396 = vmatprep.subr.mxu0 0.0
  %397 = vmatpush2.msra.mxu0 0.0
  %398 = vmatprep.subr.mxu0 0.0
  %399 = vmatpush2.msra.mxu0 0.0
  %400 = vmatprep.subr.mxu0 0.0
  %401 = vmatpush2.msra.mxu0 0.0
  %402 = vmatprep.subr.mxu0 0.0
  %403 = vmatpush2.msra.mxu0 0.0
  %404 = vmatprep.subr.mxu0 0.0
  %405 = vmatpush2.msra.mxu0 0.0
  %406 = vmatprep.subr.mxu0 0.0
  %407 = vmatpush2.msra.mxu0 0.0
  %408 = vmatprep.subr.mxu0 0.0
  %409 = vmatpush2.msra.mxu0 0.0
  %410 = vmatprep.subr.mxu0 0.0
  %411 = vmatpush2.msra.mxu0 0.0
  %412 = vmatprep.subr.mxu0 0.0
  %413 = vmatpush2.msra.mxu0 0.0
  %414 = vmatprep.subr.mxu0 0.0
  %415 = vmatpush2.msra.mxu0 0.0
  %416 = vmatprep.subr.mxu0 0.0
  %417 = vmatpush2.msra.mxu0 0.0
  %418 = vmatprep.mubr.f32.mxu0 0.0
  %419 = vmatmul.mubr.f32.gmra.mxu0 %v352
  %v420 = vpop.f32.mrf.mxu0
  %v421 = vadd.f32 %v350, %v420
  %v422 = vpop.f32.mrf.mxu0
  %423 = vdwg.mxu0
  %v424 = vsel %vm99, %v421, 0.0
  %425 = vadd.xlane.f32.xlu0 %v424
  %v426 = vpop.xlane.xlu0 %425
  %v427 = vmul.f32 %v426, %v103
  %v428 = vsub.f32 %v421, %v427
  %v429 = vmul.f32 %v428, %v428
  %v430 = vsel %vm99, %v429, 0.0
  %431 = vadd.xlane.f32.xlu0 %v430
  %v432 = vpop.xlane.xlu0 %431
  %v433 = vmul.f32 %v432, %v103
  %v434 = vadd.f32 %v433, 1e-05
  %v435 = vrsqrt.pop %v434
  %v436 = vmul.f32 %v428, %v435
  %v437 = vlaneseq
  %v438 = vshrl.u32 %v437, 7
  %v439 = vsub.s32 1, %v438
  %v440 = vrot.slane %v247, %v439
  %v441 = vmul.f32 %v436, %v440
  %v442 = vlaneseq
  %v443 = vshrl.u32 %v442, 7
  %v444 = vsub.s32 2, %v443
  %v445 = vrot.slane %v247, %v444
  %v446 = vadd.f32 %v441, %v445
  %v447 = vmax.f32 %v446, 0.0
  %v448 = vlaneseq
  %v449 = vshrl.u32 %v448, 7
  %v450 = vsub.s32 0, %v449
  %v451 = vrot.slane %v248, %v450
  %v452 = vmul.f32 %v447, %v451
  %v453 = vsel %vm99, %v452, 0.0
  %454 = vadd.xlane.f32.xlu0 %v453
  %v455 = vpop.xlane.xlu0 %454
  %v456 = vlaneseq
  %v457 = vshrl.u32 %v456, 7
  %v458 = vsub.s32 1, %v457
  %v459 = vrot.slane %v248, %v458
  %v460 = vadd.f32 %v455, %v459
  %v461 = vmin.f32 %v238, %v460
  %vm462 = vcmask 7168
  %463 = vst.msk [vmem:[%s2] sm:$0xff] %vm462, %v461
  // Predicated region
  $region10: #{tpu_custom_call.1} parent=0 // pred_check
    _
  $region11: #{tpu_custom_call.1} parent=0 // pred_check_branch
    %465 = sbr.rel (0) target = $region13
  $region12: #{tpu_custom_call.1} parent=0 // pred_region
    _
  $region13: #{tpu_custom_call.1} parent=0 // pred_fallthru
    _
  // Predicated region
  $region14: #{tpu_custom_call.1} parent=0 // pred_check
    _
  $region15: #{tpu_custom_call.1} parent=0 // pred_check_branch
    %467 = sbr.rel (0) target = $region17
  $region16: #{tpu_custom_call.1} parent=0 // pred_region
    _
  $region17: #{tpu_custom_call.1} parent=0 // pred_fallthru
    _

</llo_original>
